<compile_context>
chip_gen: v7x
topology: tpu7x:2x2x1
jax: 0.10.0
libtpu: 0.0.40
codegen_flags: <defaults>
</compile_context>

<pallas_src>
import functools

import jax
import jax.numpy as jnp
from jax import lax
from jax.experimental import pallas as pl
from jax.experimental.pallas import tpu as pltpu


def _round_up(v, m):
    return ((v + m - 1) // m) * m


# ---------------------------------------------------------------------------
# Kernel bodies.  Fixed filter [-1, 4, -1] (cross-correlation, zero padding):
#   y[j] = -xp[j] + 4*xp[j+1] - xp[j+2]
# ---------------------------------------------------------------------------

def _laplace1d_roll_kernel(x_ref, o_ref, *, L):
    # pad == 1 and L % 128 == 0: scratch-free fast path.
    #   y[j] = 4*x[j] - x[j-1] - x[j+1],  with x[-1] = x[L] = 0 (zero padding)
    # The +/-1 lane shifts are cyclic rolls (land on the otherwise-idle XLU);
    # the spurious wrap-around contributions (x[L-1] onto j==0 and x[0] onto
    # j==L-1) are subtracted out, which reproduces the zero padding without
    # assembling a padded copy in VMEM.
    x = x_ref[...]
    nbr = pltpu.roll(x, 1, 1) + pltpu.roll(x, L - 1, 1)  # x[j-1] + x[j+1] (cyclic)
    col = lax.broadcasted_iota(jnp.int32, x.shape, 1)
    first = x[:, 0:1]        # x[0]   wraps onto j == L-1
    last = x[:, L - 1:L]     # x[L-1] wraps onto j == 0
    nbr = jnp.where(col == 0, nbr - last, nbr)
    nbr = jnp.where(col == L - 1, nbr - first, nbr)
    o_ref[...] = 4.0 * x - nbr


def _laplace1d_valid_kernel(x_ref, o_ref, *, L_out):
    # pad == 0: "valid" convolution, pure overlapping reads of the input block.
    x = x_ref[...]
    o_ref[...] = 4.0 * x[:, 1:1 + L_out] - (x[:, 0:L_out] + x[:, 2:2 + L_out])


def _laplace1d_scratch_kernel(x_ref, o_ref, xp_ref, *, pad, L, L_out):
    # General pad (and unaligned-L pad==1): assemble the zero-padded row in a
    # VMEM scratch.  Only the halo lanes are zeroed each grid step; the body
    # lanes are fully overwritten by the copy-in.
    tn = xp_ref.shape[0]
    halo = jnp.zeros((tn, pad), dtype=xp_ref.dtype)
    xp_ref[:, 0:pad] = halo
    xp_ref[:, pad + L:pad + L + pad] = halo
    xp_ref[:, pad:pad + L] = x_ref[...]

    x0 = xp_ref[:, 0:L_out]
    x1 = xp_ref[:, 1:1 + L_out]
    x2 = xp_ref[:, 2:2 + L_out]
    o_ref[...] = 4.0 * x1 - (x0 + x2)


def laplace1d_pallas(x, padding=None, block_rows=None):
    """x: (N, 1, L) float32 -> (N, 1, L + 2*pad - 2) float32 (pad defaults to 1)."""
    K = 3
    pad = (K // 2) if padding is None else int(padding)
    N, C, L = x.shape
    assert C == 1, "Laplace1d filter has a single input channel"
    L_out = L + 2 * pad - (K - 1)
    assert L_out >= 1, "output length must be positive"

    x2d = x.reshape(N, L).astype(jnp.float32)

    use_roll = (pad == 1) and (L % 128 == 0)
    use_valid = (pad == 0)
    use_scratch = not (use_roll or use_valid)
    scratch_w = L + 2 * pad

    # Row tiling: per-row pipelined footprint = double-buffered in + out
    # (+ single scratch row for the scratch path).  ~20 MiB budget with an
    # explicit 32 MiB vmem limit is safe on v5e/v6e/v7x.
    # TODO(synk): for very long L that cannot fit even an 8-row block, add
    # L-tiling with a 2*pad halo (overlapping index_map); not needed here.
    bytes_per_row = 4 * (2 * L + 2 * L_out) + (4 * scratch_w if use_scratch else 0)
    budget_bytes = 20 * 1024 * 1024
    if block_rows is None:
        tn = max(budget_bytes // bytes_per_row, 8)
        # Keep >= 2 grid steps when there is enough work so the "parallel"
        # N axis can be sharded across both v7x TensorCores.
        if N > 8:
            tn = min(tn, _round_up(pl.cdiv(N, 2), 8))
    else:
        tn = int(block_rows)

    if tn >= N:
        TN = N                      # single / full block: equals full dim, no 8-alignment needed
    else:
        TN = max(8, (tn // 8) * 8)  # multiple of 8; ragged last block is masked by Pallas

    grid = (pl.cdiv(N, TN),)

    if use_roll:
        kernel = functools.partial(_laplace1d_roll_kernel, L=L)
        scratch_shapes = []
    elif use_valid:
        kernel = functools.partial(_laplace1d_valid_kernel, L_out=L_out)
        scratch_shapes = []
    else:
        kernel = functools.partial(_laplace1d_scratch_kernel, pad=pad, L=L, L_out=L_out)
        scratch_shapes = [pltpu.VMEM((TN, scratch_w), jnp.float32)]

    out = pl.pallas_call(
        kernel,
        out_shape=jax.ShapeDtypeStruct((N, L_out), jnp.float32),
        grid=grid,
        in_specs=[pl.BlockSpec((TN, L), lambda i: (i, 0))],
        out_specs=pl.BlockSpec((TN, L_out), lambda i: (i, 0)),
        scratch_shapes=scratch_shapes,
        compiler_params=pltpu.CompilerParams(
            dimension_semantics=("parallel",),
            vmem_limit_bytes=32 * 1024 * 1024),
    )(x2d)

    return out.reshape(N, 1, L_out)


def _reference(x, padding=None):
    # plain-JAX reference of F.conv1d(x, [-1,4,-1][None,None], padding=pad)
    filt = jnp.asarray([-1.0, 4.0, -1.0], dtype=jnp.float32)
    K = filt.shape[0]
    pad = (K // 2) if padding is None else int(padding)
    N, _, L = x.shape
    xp = jnp.pad(x[:, 0, :], ((0, 0), (pad, pad)))
    L_out = L + 2 * pad - (K - 1)
    y = sum(filt[k] * xp[:, k:k + L_out] for k in range(K))
    return y[:, None, :]


if __name__ == "__main__":
    k0, k1, k2 = jax.random.split(jax.random.PRNGKey(0), 3)

    # Case 1: module defaults (padding=None -> 1), small NCL input (scratch path).
    N, C, L = 2, 1, 16
    x = jax.random.normal(k0, (N, C, L), dtype=jnp.float32)
    y = laplace1d_pallas(x, padding=None)
    jax.block_until_ready(y)
    y_ref = _reference(x, padding=None)
    assert y.shape == (N, 1, L), y.shape
    assert jnp.allclose(y, y_ref, atol=1e-5, rtol=1e-5), "mismatch vs reference (case 1)"

    # Case 2: explicit padding=2, multi-block row grid with a ragged tail block
    # (scratch path, true-width unpadded output).
    N2, L2, pad2 = 20, 200, 2
    x2 = jax.random.normal(k1, (N2, 1, L2), dtype=jnp.float32)
    y2 = laplace1d_pallas(x2, padding=pad2, block_rows=8)
    jax.block_until_ready(y2)
    y2_ref = _reference(x2, padding=pad2)
    assert y2.shape == (N2, 1, L2 + 2 * pad2 - 2), y2.shape
    assert jnp.allclose(y2, y2_ref, atol=1e-5, rtol=1e-5), "mismatch vs reference (case 2)"

    # Case 3: default padding with lane-aligned L -> scratch-free roll kernel,
    # 2 grid steps (megacore-friendly) with a ragged last block.
    N3, L3 = 24, 128
    x3 = jax.random.normal(k2, (N3, 1, L3), dtype=jnp.float32)
    y3 = laplace1d_pallas(x3, padding=None)
    jax.block_until_ready(y3)
    y3_ref = _reference(x3, padding=None)
    assert y3.shape == (N3, 1, L3), y3.shape
    assert jnp.allclose(y3, y3_ref, atol=1e-5, rtol=1e-5), "mismatch vs reference (case 3)"

    print("KERNEL_OK")
</pallas_src>

<mosaic_0001>
module attributes {stable_mosaic.version = 11 : i64} {
  func.func @_laplace1d_scratch_kernel(%arg0: i32, %arg1: memref<2x16xf32, #tpu.memory_space<vmem>>, %arg2: memref<2x16xf32, #tpu.memory_space<vmem>>, %arg3: memref<2x18xf32, #tpu.memory_space<vmem>>) attributes {dimension_semantics = [#tpu.dimension_semantics<parallel>], iteration_bounds = array<i64: 1>, scalar_prefetch = 0 : i64, scratch_operands = 1 : i64, tpu.core_type = #tpu.core_type<tc>, window_params = [{transform_indices = @transform_0, window_bounds = array<i64: 2, 16>}, {transform_indices = @transform_1, window_bounds = array<i64: 2, 16>}]} {
    %cst = arith.constant 0.000000e+00 : f32
    %0 = vector.broadcast %cst : f32 to vector<2x1xf32>
    %c0 = arith.constant 0 : index
    %c0_0 = arith.constant 0 : index
    %1 = vector.load %arg3[%c0, %c0_0] : memref<2x18xf32, #tpu.memory_space<vmem>>, vector<2x1xf32>
    tpu.vector_store %arg3[%c0, %c0_0], %0 {strides = array<i32>} : memref<2x18xf32, #tpu.memory_space<vmem>>, vector<2x1xf32>,
    %c0_1 = arith.constant 0 : index
    %c17 = arith.constant 17 : index
    %2 = vector.load %arg3[%c0_1, %c17] : memref<2x18xf32, #tpu.memory_space<vmem>>, vector<2x1xf32>
    tpu.vector_store %arg3[%c0_1, %c17], %0 {strides = array<i32>} : memref<2x18xf32, #tpu.memory_space<vmem>>, vector<2x1xf32>,
    %c0_2 = arith.constant 0 : index
    %c0_3 = arith.constant 0 : index
    %3 = vector.load %arg1[%c0_2, %c0_3] : memref<2x16xf32, #tpu.memory_space<vmem>>, vector<2x16xf32>
    %c0_4 = arith.constant 0 : index
    %c1 = arith.constant 1 : index
    %4 = vector.load %arg3[%c0_4, %c1] : memref<2x18xf32, #tpu.memory_space<vmem>>, vector<2x16xf32>
    tpu.vector_store %arg3[%c0_4, %c1], %3 {strides = array<i32>} : memref<2x18xf32, #tpu.memory_space<vmem>>, vector<2x16xf32>,
    %c0_5 = arith.constant 0 : index
    %c0_6 = arith.constant 0 : index
    %5 = vector.load %arg3[%c0_5, %c0_6] : memref<2x18xf32, #tpu.memory_space<vmem>>, vector<2x16xf32>
    %c0_7 = arith.constant 0 : index
    %c1_8 = arith.constant 1 : index
    %6 = vector.load %arg3[%c0_7, %c1_8] : memref<2x18xf32, #tpu.memory_space<vmem>>, vector<2x16xf32>
    %c0_9 = arith.constant 0 : index
    %c2 = arith.constant 2 : index
    %7 = vector.load %arg3[%c0_9, %c2] : memref<2x18xf32, #tpu.memory_space<vmem>>, vector<2x16xf32>
    %cst_10 = arith.constant 4.000000e+00 : f32
    %8 = vector.broadcast %cst_10 : f32 to vector<2x16xf32>
    %9 = arith.mulf %8, %6 : vector<2x16xf32>
    %10 = arith.addf %5, %7 : vector<2x16xf32>
    %11 = arith.subf %9, %10 : vector<2x16xf32>
    %c0_11 = arith.constant 0 : index
    %c0_12 = arith.constant 0 : index
    %12 = vector.load %arg2[%c0_11, %c0_12] : memref<2x16xf32, #tpu.memory_space<vmem>>, vector<2x16xf32>
    tpu.vector_store %arg2[%c0_11, %c0_12], %11 {strides = array<i32>} : memref<2x16xf32, #tpu.memory_space<vmem>>, vector<2x16xf32>,
    return
  }
  func.func @transform_0(%arg0: i32) -> (i32, i32) {
    %c0_i32 = arith.constant 0 : i32
    %c0_i32_0 = arith.constant 0 : i32
    return %arg0, %c0_i32 : i32, i32
  }
  func.func @transform_1(%arg0: i32) -> (i32, i32) {
    %c0_i32 = arith.constant 0 : i32
    %c0_i32_0 = arith.constant 0 : i32
    return %arg0, %c0_i32 : i32, i32
  }
}

</mosaic_0001>

<llo_original>
// kernel: tpu_custom_call.1
$region0: #{tpu_custom_call.1}
  #allocation0 [shape = 'u32[]', space=smem, size = 0x4, offset = 0x4, fixed_abs, tag = 'smem constant byte address 0x4 - core index']
  #allocation1 [shape = 'u32[144,128]{1,0:T(1,128)}', space=vmem, size = 0x12000, scoped, tag = 'internal scratch']
  #allocation2 [shape = 'f32[2,18]{1,0:T(2,128)}', space=vmem, size = 0x400, scoped, tag = 'scratch operand']
  %s0 = inlined_call_operand.hbm [shape: f32[2,16], index: 0, kind: input, shape index: {}]
  %s1 = inlined_call_operand.hbm [shape: f32[2,16], index: 1, kind: output, shape index: {}]
  %s2 = sld [smem:[#allocation0]]
  $region18: #{tpu_custom_call.1} parent=0
    _
  %s4 = ssub.s32 1, %s2
  %s5 = scalar_select 0, %s4, %s2
  $region1: #{tpu_custom_call.1} parent=0
    #allocation3 [shape = 'u8[1024]{0}', space=vmem, size = 0x400, scoped, tag = 'input window, operand 0, single buffered']
    #allocation4 [shape = 's32[1]{0}', space=sflag, size = 0x4, scoped, tag = 'scoped memory for tpu_custom_call.1']
    #allocation5 [shape = 's32[1]{0}', space=sflag, size = 0x4, scoped, tag = 'scoped memory for tpu_custom_call.1']
    #allocation6 [shape = 'u8[1024]{0}', space=vmem, size = 0x400, scoped, tag = 'output window, operand 0, single buffered']
    %6 = vsyncpa [#allocation4], 0
    %7 = vsyncpa [#allocation5], 0
    // Predicated region
    $region2: #{tpu_custom_call.1} parent=1 // pred_check
      _
    $region3: #{tpu_custom_call.1} parent=1 // pred_check_branch
      %9 = sbr.rel (0) target = $region5
    $region4: #{tpu_custom_call.1} parent=1 // pred_region
      %s11 = ssub.s32 32, 32
      %12 = vsyncadd [#allocation4], %s11
      %s14 = sshll.u32 [#allocation3], 4
      %s15 = int_to_ptr.vmem [resolvable:$true] %s14
      %17 = dma.hbm_to_vmem [thread:$0]  %s0, 32, %s15, [#allocation4]
    $region5: #{tpu_custom_call.1} parent=1 // pred_fallthru
      _
    // Predicated region
    $region6: #{tpu_custom_call.1} parent=1 // pred_check
      _
    $region7: #{tpu_custom_call.1} parent=1 // pred_check_branch
      %19 = sbr.rel (0) target = $region9
    $region8: #{tpu_custom_call.1} parent=1 // pred_region
      %20 = dma.done [#allocation4], 32
    $region9: #{tpu_custom_call.1} parent=1 // pred_fallthru
      _
    %vm21 = vcmask 1024
    %22 = vst.msk [vmem:[#allocation2] sm:$0x3] %vm21, 0.0
    %vm23 = vcmask 140424
    %24 = vst.msk [vmem:[#allocation2] sm:$0x3] %vm23, 0.0
    %v25 = vld [vmem:[#allocation3] sm:$0x3]
    %27 = vrot.lane.b32.xlu0 %v25, 1
    %v28 = vpop.permute.xlu0 %27
    %vm30 = vcmask 132104
    %31 = vst.msk [vmem:[#allocation2] sm:$0x3] %vm30, %v28
    %v32 = vld [vmem:[#allocation2] sm:$0x3]
    %v33 = vmul.f32 %v32, 4.0
    %35 = vrot.lane.b32.xlu0 %v32, 126
    %v36 = vpop.permute.xlu0 %35
    %v38 = vadd.f32 %v32, %v36
    %40 = vrot.lane.b32.xlu0 %v38, 1
    %v41 = vpop.permute.xlu0 %40
    %v43 = vsub.f32 %v33, %v41
    %45 = vrot.lane.b32.xlu0 %v43, 127
    %v46 = vpop.permute.xlu0 %45
    %vm48 = vcmask 123904
    %49 = vst.msk [vmem:[#allocation6] sm:$0x3] %vm48, %v46
    // Predicated region
    $region10: #{tpu_custom_call.1} parent=1 // pred_check
      _
    $region11: #{tpu_custom_call.1} parent=1 // pred_check_branch
      %51 = sbr.rel (0) target = $region13
    $region12: #{tpu_custom_call.1} parent=1 // pred_region
      %s53 = ssub.s32 32, 32
      %54 = vsyncadd [#allocation5], %s53
      %s56 = sshll.u32 [#allocation6], 4
      %s57 = int_to_ptr.vmem [resolvable:$true] %s56
      %59 = dma.vmem_to_hbm [thread:$0]  %s57, 32, %s1, [#allocation5]
    $region13: #{tpu_custom_call.1} parent=1 // pred_fallthru
      _
    // Predicated region
    $region14: #{tpu_custom_call.1} parent=1 // pred_check
      _
    $region15: #{tpu_custom_call.1} parent=1 // pred_check_branch
      %61 = sbr.rel (0) target = $region17
    $region16: #{tpu_custom_call.1} parent=1 // pred_region
      %62 = dma.done [#allocation5], 32
    $region17: #{tpu_custom_call.1} parent=1 // pred_fallthru
      _
    %63 = vsyncpa [#allocation4], 1
    %64 = vsyncpa [#allocation5], 1

</llo_original>
